<compile_context>
chip_gen: v5e
topology: v5e:2x2
jax: 0.10.0
libtpu: 0.0.40
codegen_flags: <defaults>
</compile_context>

<pallas_src>
import jax
import jax.numpy as jnp
from jax.experimental import pallas as pl
from jax.experimental.pallas import tpu as pltpu


def _round_up(x, m):
    return ((x + m - 1) // m) * m


def sgns_kernel(idx_ref, w1t_ref, w2t_ref, out_ref):
    # idx_ref:  VMEM (2, TB) int32  -- row 0: number_1, row 1: number_2
    # w1t_ref:  VMEM (W, D)         -- (w1 + b1).T, resident across all steps
    # w2t_ref:  VMEM (W, D)         -- (w2 + b2).T, resident across all steps
    # out_ref:  VMEM (1, 1, TB) f32 -- sigmoid(dot(p1, p2)) per pair, lane-dense
    tb = out_ref.shape[-1]
    d = w1t_ref.shape[1]

    # One-hot selection matrices in (D, TB) orientation, built from lane
    # vectors of indices (broadcast along sublanes is cheap).
    row = jax.lax.broadcasted_iota(jnp.int32, (d, tb), 0)          # (D, TB)
    oh1 = (row == idx_ref[0:1, :]).astype(w1t_ref.dtype)           # (D, TB)
    oh2 = (row == idx_ref[1:2, :]).astype(w2t_ref.dtype)           # (D, TB)

    # MXU gather: column t of p_k is the embedding (w_k + b_k)[idx_k[t], :].
    p1 = jnp.dot(w1t_ref[...], oh1, preferred_element_type=jnp.float32)  # (W, TB)
    p2 = jnp.dot(w2t_ref[...], oh2, preferred_element_type=jnp.float32)  # (W, TB)

    # Per-pair dot product: reduce over the W (sublane) axis -> lane-dense row.
    s = jnp.sum(p1 * p2, axis=0, keepdims=True)                    # (1, TB) f32
    out_ref[...] = jax.nn.sigmoid(s)[None]                         # (1, 1, TB)


def sgns_forward_batched(indices, w1, b1, w2, b2, *, tb=256):
    """Batched SGNS forward.

    indices: (B, 2) int32 -- rows of (number_1, number_2) pairs.
    w1, w2:  (D, W) weights (stored transposed vs. torch Linear, so that
             Linear_k(one_hot(i)) == w_k[i] + b_k).
    b1, b2:  (W,) biases.
    Returns (B, 2) f32 with rows [1 - sigmoid(dot), sigmoid(dot)].
    """
    D, W = w1.shape
    B = indices.shape[0]

    # Pair-block size: multiple of 128 (lane-dense output), don't over-pad
    # tiny batches.
    tb = _round_up(max(int(tb), 128), 128)
    tb = min(tb, _round_up(B, 128))
    b_pad = _round_up(B, tb)
    num_blocks = b_pad // tb

    # Clamp on the host: an out-of-range index must not silently select
    # garbage (note: differs from torch, which would raise / return None).
    idx = jnp.clip(indices.astype(jnp.int32), 0, D - 1)
    idx = jnp.pad(idx, ((0, b_pad - B), (0, 0)))                   # (B_pad, 2)
    idx_t = idx.T                                                  # (2, B_pad)

    # Fold biases and transpose once on the host (amortized over all calls).
    w1t = (w1 + b1[None, :]).T                                     # (W, D)
    w2t = (w2 + b2[None, :]).T                                     # (W, D)

    # VMEM-resident weight plan: keep it well under the 32 MiB default scoped
    # limit (and v7x's 64 MiB physical VMEM).
    itemsize = jnp.dtype(w1t.dtype).itemsize
    resident_bytes = 2 * D * W * itemsize
    assert resident_bytes <= 16 * 1024 * 1024, (
        "vocab too large for VMEM-resident weights")
    # TODO(synk): large-vocab path -- memory_space=pl.ANY weights + manual
    # batched pltpu.make_async_copy row gather with double buffering.

    est = (
        2 * resident_bytes                      # both weight matrices
        + 2 * (2 * tb + tb) * 4                 # double-buffered idx/out blocks
        + 4 * tb * (D + W) * 4                  # one-hot / embedding temps
        + (1 << 20)                             # slack
    )
    vmem_limit = min(64 * 1024 * 1024, max(32 * 1024 * 1024, 2 * est))

    grid_spec = pltpu.PrefetchScalarGridSpec(
        num_scalar_prefetch=0,
        grid=(num_blocks,),
        in_specs=[
            pl.BlockSpec((2, tb), lambda g: (0, g)),   # indices for this block
            pl.BlockSpec((W, D), lambda g: (0, 0)),    # resident (w1+b1).T
            pl.BlockSpec((W, D), lambda g: (0, 0)),    # resident (w2+b2).T
        ],
        out_specs=pl.BlockSpec((1, 1, tb), lambda g: (g, 0, 0)),
    )

    p = pl.pallas_call(
        sgns_kernel,
        out_shape=jax.ShapeDtypeStruct((num_blocks, 1, tb), jnp.float32),
        grid_spec=grid_spec,
        compiler_params=pltpu.CompilerParams(
            # Pair-blocks are independent -> let v7x's two TensorCores split.
            dimension_semantics=("parallel",),
            vmem_limit_bytes=int(vmem_limit),
        ),
    )(idx_t, w1t, w2t)

    p = p.reshape(b_pad)[:B]
    return jnp.stack([1.0 - p, p], axis=-1)


def sgns_forward(number_1, number_2, w1, b1, w2, b2):
    """Single-pair convenience wrapper matching the original module call."""
    idx = jnp.asarray([[number_1, number_2]], dtype=jnp.int32)
    return sgns_forward_batched(idx, w1, b1, w2, b2)  # (1, 2)


def sgns_reference(indices, w1, b1, w2, b2):
    D = w1.shape[0]
    x1 = jax.nn.one_hot(indices[:, 0], D, dtype=jnp.float32)
    x2 = jax.nn.one_hot(indices[:, 1], D, dtype=jnp.float32)
    p1 = x1 @ w1 + b1
    p2 = x2 @ w2 + b2
    s = jnp.sum(p1 * p2, axis=-1)
    p = jax.nn.sigmoid(s)
    return jnp.stack([1.0 - p, p], axis=-1)


if __name__ == "__main__":
    # Dict size D=256, embedding width W=128, batch of B=300 pairs
    # (pads to 512 -> 2 grid blocks of TB=256).
    D_dim, W_dim, B = 256, 128, 300

    key = jax.random.PRNGKey(0)
    k1, k2, k3, k4, k5 = jax.random.split(key, 5)
    # Deterministic init mimicking torch.nn.Linear's uniform(-1/sqrt(D), 1/sqrt(D)).
    bound = 1.0 / (D_dim ** 0.5)
    w1 = jax.random.uniform(k1, (D_dim, W_dim), jnp.float32, -bound, bound)
    b1 = jax.random.uniform(k2, (W_dim,), jnp.float32, -bound, bound)
    w2 = jax.random.uniform(k3, (D_dim, W_dim), jnp.float32, -bound, bound)
    b2 = jax.random.uniform(k4, (W_dim,), jnp.float32, -bound, bound)

    indices = jax.random.randint(k5, (B, 2), 0, D_dim, dtype=jnp.int32)

    # Batched kernel call.
    out = jax.block_until_ready(sgns_forward_batched(indices, w1, b1, w2, b2))
    ref = sgns_reference(indices, w1, b1, w2, b2)
    assert out.shape == (B, 2)
    assert jnp.allclose(out, ref, atol=1e-5, rtol=1e-5), (out, ref)
    assert jnp.allclose(out.sum(axis=-1), jnp.ones((B,)), atol=1e-5)

    # Single-pair call matching the original module interface.
    out1 = jax.block_until_ready(sgns_forward(7, 123, w1, b1, w2, b2))
    ref1 = sgns_reference(jnp.asarray([[7, 123]], jnp.int32), w1, b1, w2, b2)
    assert out1.shape == (1, 2)
    assert jnp.allclose(out1, ref1, atol=1e-5, rtol=1e-5), (out1, ref1)

    print("KERNEL_OK")
</pallas_src>

<mosaic_0001>
module attributes {stable_mosaic.version = 11 : i64} {
  func.func @sgns_kernel(%arg0: i32, %arg1: memref<2x256xi32, #tpu.memory_space<vmem>>, %arg2: memref<128x256xf32, #tpu.memory_space<vmem>>, %arg3: memref<128x256xf32, #tpu.memory_space<vmem>>, %arg4: memref<1x1x256xf32, #tpu.memory_space<vmem>>) attributes {dimension_semantics = [#tpu.dimension_semantics<parallel>], iteration_bounds = array<i64: 2>, scalar_prefetch = 0 : i64, scratch_operands = 0 : i64, tpu.core_type = #tpu.core_type<tc>, window_params = [{transform_indices = @transform_0, window_bounds = array<i64: 2, 256>}, {pipeline_mode = #tpu.pipeline_mode<synchronous>, transform_indices = @transform_1, window_bounds = array<i64: 128, 256>}, {pipeline_mode = #tpu.pipeline_mode<synchronous>, transform_indices = @transform_2, window_bounds = array<i64: 128, 256>}, {transform_indices = @transform_3, window_bounds = array<i64: 1, 1, 256>}]} {
    %0 = tpu.iota {dimensions = array<i32: 0>} : vector<256x256xi32>
    %c0 = arith.constant 0 : index
    %c0_0 = arith.constant 0 : index
    %1 = vector.load %arg1[%c0, %c0_0] : memref<2x256xi32, #tpu.memory_space<vmem>>, vector<1x256xi32>
    %2 = vector.broadcast %1 : vector<1x256xi32> to vector<256x256xi32>
    %3 = arith.cmpi eq, %0, %2 : vector<256x256xi32>
    %4 = arith.extui %3 : vector<256x256xi1> to vector<256x256xi32>
    %5 = arith.sitofp %4 : vector<256x256xi32> to vector<256x256xf32>
    %c1 = arith.constant 1 : index
    %c0_1 = arith.constant 0 : index
    %6 = vector.load %arg1[%c1, %c0_1] : memref<2x256xi32, #tpu.memory_space<vmem>>, vector<1x256xi32>
    %7 = vector.broadcast %6 : vector<1x256xi32> to vector<256x256xi32>
    %8 = arith.cmpi eq, %0, %7 : vector<256x256xi32>
    %9 = arith.extui %8 : vector<256x256xi1> to vector<256x256xi32>
    %10 = arith.sitofp %9 : vector<256x256xi32> to vector<256x256xf32>
    %c0_2 = arith.constant 0 : index
    %c0_3 = arith.constant 0 : index
    %11 = vector.load %arg2[%c0_2, %c0_3] : memref<128x256xf32, #tpu.memory_space<vmem>>, vector<128x256xf32>
    %cst = arith.constant dense<0.000000e+00> : vector<128x256xf32>
    %12 = tpu.matmul %11, %5, %cst {dimension_numbers = #tpu.dot_dimension_numbers<[1], [0], [0], [1], [0, 0, 1, 1], [], []>} : vector<128x256xf32>, vector<256x256xf32>, vector<128x256xf32> -> vector<128x256xf32>
    %c0_4 = arith.constant 0 : index
    %c0_5 = arith.constant 0 : index
    %13 = vector.load %arg3[%c0_4, %c0_5] : memref<128x256xf32, #tpu.memory_space<vmem>>, vector<128x256xf32>
    %cst_6 = arith.constant dense<0.000000e+00> : vector<128x256xf32>
    %14 = tpu.matmul %13, %10, %cst_6 {dimension_numbers = #tpu.dot_dimension_numbers<[1], [0], [0], [1], [0, 0, 1, 1], [], []>} : vector<128x256xf32>, vector<256x256xf32>, vector<128x256xf32> -> vector<128x256xf32>
    %15 = arith.mulf %12, %14 : vector<128x256xf32>
    %cst_7 = arith.constant dense<0.000000e+00> : vector<256xf32>
    %16 = vector.multi_reduction <add>, %15, %cst_7 [0] : vector<128x256xf32> to vector<256xf32>
    %17 = vector.shape_cast %16 : vector<256xf32> to vector<1x256xf32>
    %18 = arith.negf %17 : vector<1x256xf32>
    %19 = math.exp %18 : vector<1x256xf32>
    %cst_8 = arith.constant 1.000000e+00 : f32
    %20 = vector.broadcast %cst_8 : f32 to vector<1x256xf32>
    %21 = arith.addf %20, %19 : vector<1x256xf32>
    %22 = arith.divf %20, %21 : vector<1x256xf32>
    %23 = vector.shape_cast %22 : vector<1x256xf32> to vector<1x1x256xf32>
    %c0_9 = arith.constant 0 : index
    %c0_10 = arith.constant 0 : index
    %c0_11 = arith.constant 0 : index
    %24 = vector.load %arg4[%c0_9, %c0_10, %c0_11] : memref<1x1x256xf32, #tpu.memory_space<vmem>>, vector<1x1x256xf32>
    tpu.vector_store %arg4[%c0_9, %c0_10, %c0_11], %23 {strides = array<i32>} : memref<1x1x256xf32, #tpu.memory_space<vmem>>, vector<1x1x256xf32>,
    return
  }
  func.func @transform_0(%arg0: i32) -> (i32, i32) {
    %c0_i32 = arith.constant 0 : i32
    %c0_i32_0 = arith.constant 0 : i32
    return %c0_i32, %arg0 : i32, i32
  }
  func.func @transform_1(%arg0: i32) -> (i32, i32) {
    %c0_i32 = arith.constant 0 : i32
    %c0_i32_0 = arith.constant 0 : i32
    %c0_i32_1 = arith.constant 0 : i32
    return %c0_i32, %c0_i32_0 : i32, i32
  }
  func.func @transform_2(%arg0: i32) -> (i32, i32) {
    %c0_i32 = arith.constant 0 : i32
    %c0_i32_0 = arith.constant 0 : i32
    %c0_i32_1 = arith.constant 0 : i32
    return %c0_i32, %c0_i32_0 : i32, i32
  }
  func.func @transform_3(%arg0: i32) -> (i32, i32, i32) {
    %c0_i32 = arith.constant 0 : i32
    %c0_i32_0 = arith.constant 0 : i32
    %c0_i32_1 = arith.constant 0 : i32
    return %arg0, %c0_i32, %c0_i32_0 : i32, i32, i32
  }
}

</mosaic_0001>

<llo_original>
// kernel: tpu_custom_call.1
$region0: #{tpu_custom_call.1}
  #allocation0 [shape = 'u32[]', space=smem, size = 0x4, offset = 0x4, fixed_abs, tag = 'smem constant byte address 0x4 - core index']
  #allocation1 [shape = 'u32[72,128]{1,0:T(1,128)}', space=vmem, size = 0x9000, scoped, tag = 'internal scratch']
  %s0 = inlined_call_operand.hbm [shape: s32[2,512], index: 0, kind: input, shape index: {}]
  %s1 = inlined_call_operand.hbm [shape: f32[128,256], index: 1, kind: input, shape index: {}]
  %s2 = inlined_call_operand.hbm [shape: f32[128,256], index: 2, kind: input, shape index: {}]
  %s3 = inlined_call_operand.hbm [shape: f32[2,1,256], index: 3, kind: output, shape index: {}]
  %s4 = sld [smem:[#allocation0]]
  $region57: #{tpu_custom_call.1} parent=0
    _
  %s6 = ssub.s32 1, %s4
  %s7 = scalar_select 0, %s6, %s4
  $region1: #{tpu_custom_call.1} parent=0
    #allocation2 [shape = 'u8[4096]{0}', space=vmem, size = 0x1000, scoped, tag = 'input window, operand 0']
    #allocation3 [shape = 's32[2]{0}', space=sflag, size = 0x8, scoped, tag = 'scoped memory for tpu_custom_call.1']
    #allocation4 [shape = 's32[2]{0}', space=sflag, size = 0x8, scoped, tag = 'scoped memory for tpu_custom_call.1']
    #allocation5 [shape = 'u8[131072]{0}', space=vmem, size = 0x20000, scoped, tag = 'input window, operand 1, single buffered']
    #allocation6 [shape = 's32[1]{0}', space=sflag, size = 0x4, scoped, tag = 'scoped memory for tpu_custom_call.1']
    #allocation7 [shape = 'u8[131072]{0}', space=vmem, size = 0x20000, scoped, tag = 'input window, operand 2, single buffered']
    #allocation8 [shape = 'u8[2048]{0}', space=vmem, size = 0x800, scoped, tag = 'output window, operand 0']
    %8 = vsyncpa [#allocation3], 0
    %s9 = scalar_lea.sflag [#allocation3], 1
    %10 = vsyncpa %s9, 0
    %11 = vsyncpa [#allocation6], 0
    %12 = vsyncpa [#allocation4], 0
    %s13 = scalar_lea.sflag [#allocation4], 1
    %14 = vsyncpa %s13, 0
    loop: start=0, step=1, limit=4
    $region2: #{tpu_custom_call.1} parent=1 // loop_pre_header
      _
    $region3: #{tpu_custom_call.1} parent=1 // loop_header
      %s16 = sphi 0, %s20
      %p17 = scmp.ge.s32.totalorder %s16, 4
      %s26 = sphi 0, %s28
      %s29 = sphi 0, %s26
      %s30 = sphi 0, %s29
      %s46 = sphi 0, %s30
      %s50 = sphi 0, %s50
      %s52 = sphi 0, %s50
      %s53 = sphi 0, %s52
      %s67 = sphi 0, %s53
      %s71 = sphi 0, %s71
      %s73 = sphi 0, %s71
      %s74 = sphi 0, %s73
      %s88 = sphi 0, %s74
      %s94 = sphi 0, %s96
      %s97 = sphi 0, %s94
      %s98 = sphi 0, %s97
      %s114 = sphi 0, %s98
    $region4: #{tpu_custom_call.1} parent=1 // loop_header_branch
      %19 = sbr.rel (%p17) target = $region8
    $region5: #{tpu_custom_call.1} parent=1 // loop_body
      %s21 = ssub.s32 %s16, 1
      %s22 = ssub.s32 %s16, 2
      %s23 = sadd.s32 %s16, 1
      %s24 = ssub.s32 %s16, %s23
      %p25 = scmp.eq.s32.totalorder %s24, 0
      %s27 = sadd.s32 %s26, 1
      %s28 = scalar_select %p25, %s26, %s27
      %p31 = pneg %p25
      %p32 = scmp.eq.s32.totalorder %s16, 1
      %p33 = por %p31, %p32
      %p34 = scmp.ne.s32.totalorder %s26, %s29
      %p35 = scmp.eq.s32.totalorder %s16, 0
      %p36 = por %p34, %p35
      %p37 = scmp.ne.s32.totalorder %s26, %s29
      %p38 = scmp.eq.s32.totalorder %s21, 1
      %p39 = por %p37, %p38
      %p40 = scmp.ne.s32.totalorder %s29, %s30
      %p41 = scmp.eq.s32.totalorder %s21, 0
      %p42 = por %p40, %p41
      %p43 = scmp.ne.s32.totalorder %s29, %s30
      %p44 = scmp.eq.s32.totalorder %s22, 1
      %p45 = por %p43, %p44
      %p47 = scmp.ne.s32.totalorder %s30, %s46
      %p48 = scmp.eq.s32.totalorder %s22, 0
      %p49 = por %p47, %p48
      %s51 = sadd.s32 %s50, 1
      %p54 = scmp.eq.s32.totalorder %s16, 1
      %p55 = scmp.ne.s32.totalorder %s50, %s52
      %p56 = scmp.eq.s32.totalorder %s16, 0
      %p57 = por %p55, %p56
      %p58 = scmp.ne.s32.totalorder %s50, %s52
      %p59 = scmp.eq.s32.totalorder %s21, 1
      %p60 = por %p58, %p59
      %p61 = scmp.ne.s32.totalorder %s52, %s53
      %p62 = scmp.eq.s32.totalorder %s21, 0
      %p63 = por %p61, %p62
      %p64 = scmp.ne.s32.totalorder %s52, %s53
      %p65 = scmp.eq.s32.totalorder %s22, 1
      %p66 = por %p64, %p65
      %p68 = scmp.ne.s32.totalorder %s53, %s67
      %p69 = scmp.eq.s32.totalorder %s22, 0
      %p70 = por %p68, %p69
      %s72 = sadd.s32 %s71, 1
      %p75 = scmp.eq.s32.totalorder %s16, 1
      %p76 = scmp.ne.s32.totalorder %s71, %s73
      %p77 = scmp.eq.s32.totalorder %s16, 0
      %p78 = por %p76, %p77
      %p79 = scmp.ne.s32.totalorder %s71, %s73
      %p80 = scmp.eq.s32.totalorder %s21, 1
      %p81 = por %p79, %p80
      %p82 = scmp.ne.s32.totalorder %s73, %s74
      %p83 = scmp.eq.s32.totalorder %s21, 0
      %p84 = por %p82, %p83
      %p85 = scmp.ne.s32.totalorder %s73, %s74
      %p86 = scmp.eq.s32.totalorder %s22, 1
      %p87 = por %p85, %p86
      %p89 = scmp.ne.s32.totalorder %s74, %s88
      %p90 = scmp.eq.s32.totalorder %s22, 0
      %p91 = por %p89, %p90
      %s92 = ssub.s32 %s16, %s23
      %p93 = scmp.eq.s32.totalorder %s92, 0
      %s95 = sadd.s32 %s94, 1
      %s96 = scalar_select %p93, %s94, %s95
      %p99 = pneg %p93
      %p100 = scmp.eq.s32.totalorder %s16, 1
      %p101 = por %p99, %p100
      %p102 = scmp.ne.s32.totalorder %s94, %s97
      %p103 = scmp.eq.s32.totalorder %s16, 0
      %p104 = por %p102, %p103
      %p105 = scmp.ne.s32.totalorder %s94, %s97
      %p106 = scmp.eq.s32.totalorder %s21, 1
      %p107 = por %p105, %p106
      %p108 = scmp.ne.s32.totalorder %s97, %s98
      %p109 = scmp.eq.s32.totalorder %s21, 0
      %p110 = por %p108, %p109
      %p111 = scmp.ne.s32.totalorder %s97, %s98
      %p112 = scmp.eq.s32.totalorder %s22, 1
      %p113 = por %p111, %p112
      %p115 = scmp.ne.s32.totalorder %s98, %s114
      %p116 = scmp.eq.s32.totalorder %s22, 0
      %p117 = por %p115, %p116
      %p118 = scmp.le.s32.totalorder 1, %s16
      %p119 = scmp.lt.s32.totalorder %s16, 3
      %p120 = pnand %p118, %p119
      %p121 = pneg %p120
      // Predicated region
      $region9: #{tpu_custom_call.1} parent=5 // pred_check
        _
      $region10: #{tpu_custom_call.1} parent=5 // pred_check_branch
        %123 = sbr.rel (%p120) target = $region12
      $region11: #{tpu_custom_call.1} parent=5 // pred_region
        %s124 = ssub.s32 %s16, 1
        // Predicated region
        $region13: #{tpu_custom_call.1} parent=11 // pred_check
          %p125 = pneg %p63
        $region14: #{tpu_custom_call.1} parent=11 // pred_check_branch
          %127 = sbr.rel (%p125) target = $region16
        $region15: #{tpu_custom_call.1} parent=11 // pred_region
          %129 = vsyncadd [#allocation6], 0
          %s130 = sshll.u32 %s1, 4
          %s131 = int_to_ptr.hbm [resolvable:$true] %s130
          %s132 = sshll.u32 [#allocation5], 4
          %s133 = int_to_ptr.vmem [resolvable:$true] %s132
          %138 = dma.hbm_to_vmem [thread:$0]  %s131, 4096, %s133, [#allocation6], 256, 256, 16
        $region16: #{tpu_custom_call.1} parent=11 // pred_fallthru
          _
        // Predicated region
        $region17: #{tpu_custom_call.1} parent=11 // pred_check
          %p139 = pneg %p84
        $region18: #{tpu_custom_call.1} parent=11 // pred_check_branch
          %141 = sbr.rel (%p139) target = $region20
        $region19: #{tpu_custom_call.1} parent=11 // pred_region
          %143 = vsyncadd [#allocation6], 0
          %s144 = sshll.u32 %s2, 4
          %s145 = int_to_ptr.hbm [resolvable:$true] %s144
          %s146 = sshll.u32 [#allocation7], 4
          %s147 = int_to_ptr.vmem [resolvable:$true] %s146
          %152 = dma.hbm_to_vmem [thread:$0]  %s145, 4096, %s147, [#allocation6], 256, 256, 16
        $region20: #{tpu_custom_call.1} parent=11 // pred_fallthru
          _
      $region12: #{tpu_custom_call.1} parent=5 // pred_fallthru
        _
      %p153 = scmp.lt.s32.totalorder %s16, 2
      // Predicated region
      $region21: #{tpu_custom_call.1} parent=5 // pred_check
        %p154 = pneg %p153
      $region22: #{tpu_custom_call.1} parent=5 // pred_check_branch
        %156 = sbr.rel (%p154) target = $region24
      $region23: #{tpu_custom_call.1} parent=5 // pred_region
        // Predicated region
        $region25: #{tpu_custom_call.1} parent=23 // pred_check
          %p157 = pneg %p36
        $region26: #{tpu_custom_call.1} parent=23 // pred_check_branch
          %159 = sbr.rel (%p157) target = $region28
        $region27: #{tpu_custom_call.1} parent=23 // pred_region
          %s160 = sand.u32 %s26, 1
          %s161 = scalar_lea.sflag [#allocation3], %s160
          %s162 = sand.u32 %s26, 1
          %s163 = smul.addr %s162, 4
          %s164 = scalar_lea.vmem [#allocation2], %s163
          %s165 = smul.u32 2, %s16
          %167 = vsyncadd %s161, 0
          %s168 = smul.addr %s165, 2
          %s169 = scalar_lea.hbm %s0, %s168
          %s171 = sshll.u32 %s169, 4
          %s172 = int_to_ptr.hbm [resolvable:$true] %s171
          %s173 = sshll.u32 %s164, 4
          %s174 = int_to_ptr.vmem [resolvable:$true] %s173
          %176 = dma.hbm_to_vmem [thread:$0]  %s172, 64, %s174, %s161
        $region28: #{tpu_custom_call.1} parent=23 // pred_fallthru
          _
      $region24: #{tpu_custom_call.1} parent=5 // pred_fallthru
        _
      %p177 = scmp.le.s32.totalorder 1, %s16
      %p178 = scmp.lt.s32.totalorder %s16, 3
      %p179 = pnand %p177, %p178
      %p180 = pneg %p179
      // Predicated region
      $region29: #{tpu_custom_call.1} parent=5 // pred_check
        _
      $region30: #{tpu_custom_call.1} parent=5 // pred_check_branch
        %182 = sbr.rel (%p179) target = $region32
      $region31: #{tpu_custom_call.1} parent=5 // pred_region
        %s183 = ssub.s32 %s16, 1
        %s184 = sand.u32 %s29, 1
        %s185 = scalar_lea.sflag [#allocation3], %s184
        %s186 = sand.u32 %s29, 1
        %s187 = smul.addr %s186, 4
        %s188 = scalar_lea.vmem [#allocation2], %s187
        // Predicated region
        $region33: #{tpu_custom_call.1} parent=31 // pred_check
          %p189 = pneg %p42
        $region34: #{tpu_custom_call.1} parent=31 // pred_check_branch
          %191 = sbr.rel (%p189) target = $region36
        $region35: #{tpu_custom_call.1} parent=31 // pred_region
          %193 = dma.done %s185, 64
        $region36: #{tpu_custom_call.1} parent=31 // pred_fallthru
          _
        // Predicated region
        $region37: #{tpu_custom_call.1} parent=31 // pred_check
          %p194 = pneg %p63
        $region38: #{tpu_custom_call.1} parent=31 // pred_check_branch
          %196 = sbr.rel (%p194) target = $region40
        $region39: #{tpu_custom_call.1} parent=31 // pred_region
          %198 = dma.done [#allocation6], 4096
        $region40: #{tpu_custom_call.1} parent=31 // pred_fallthru
          _
        // Predicated region
        $region41: #{tpu_custom_call.1} parent=31 // pred_check
          %p199 = pneg %p84
        $region42: #{tpu_custom_call.1} parent=31 // pred_check_branch
          %201 = sbr.rel (%p199) target = $region44
        $region43: #{tpu_custom_call.1} parent=31 // pred_region
          %203 = dma.done [#allocation6], 4096
        $region44: #{tpu_custom_call.1} parent=31 // pred_fallthru
          _
        %s204 = sand.u32 %s29, 1
        %s205 = scalar_lea.sflag [#allocation3], %s204
        %s206 = sand.u32 %s29, 1
        %s207 = smul.addr %s206, 4
        %s208 = scalar_lea.vmem [#allocation2], %s207
        %p209 = pneg %p42
        %p210 = pneg %p39
        %p211 = pneg %p63
        %p212 = pneg %p60
        %p213 = pneg %p84
        %p214 = pneg %p81
        %p215 = pneg %p110
        %p216 = pneg %p107
        %s217 = sand.u32 %s97, 1
        %s218 = scalar_lea.sflag [#allocation4], %s217
        %s219 = sand.u32 %s97, 1
        %s220 = smul.addr %s219, 2
        %s221 = scalar_lea.vmem [#allocation8], %s220
        %s222 = smul.u32 2, %s21
        %v223 = vlaneseq
        %v224 = vshrl.u32 %v223, 7
        %v225 = vadd.s32 %v224, 8
        %v226 = vadd.s32 %v224, 16
        %v227 = vadd.s32 %v224, 24
        %v228 = vadd.s32 %v224, 32
        %v229 = vadd.s32 %v224, 40
        %v230 = vadd.s32 %v224, 48
        %v231 = vadd.s32 %v224, 56
        %v232 = vadd.s32 %v224, 64
        %v233 = vadd.s32 %v224, 72
        %v234 = vadd.s32 %v224, 80
        %v235 = vadd.s32 %v224, 88
        %v236 = vadd.s32 %v224, 96
        %v237 = vadd.s32 %v224, 104
        %v238 = vadd.s32 %v224, 112
        %v239 = vadd.s32 %v224, 120
        %v240 = vadd.s32 %v224, 128
        %v241 = vadd.s32 %v224, 136
        %v242 = vadd.s32 %v224, 144
        %v243 = vadd.s32 %v224, 152
        %v244 = vadd.s32 %v224, 160
        %v245 = vadd.s32 %v224, 168
        %v246 = vadd.s32 %v224, 176
        %v247 = vadd.s32 %v224, 184
        %v248 = vadd.s32 %v224, 192
        %v249 = vadd.s32 %v224, 200
        %v250 = vadd.s32 %v224, 208
        %v251 = vadd.s32 %v224, 216
        %v252 = vadd.s32 %v224, 224
        %v253 = vadd.s32 %v224, 232
        %v254 = vadd.s32 %v224, 240
        %v255 = vadd.s32 %v224, 248
        %v256 = vld [vmem:[%s188] ss:$2 sm:$0x3]
        %v257 = vperm.slane %v256, 0
        %v258 = vperm.slane %v256, 1
        %vm259 = vcmp.eq.s32.totalorder %v224, %v257
        %vm260 = vcmp.eq.s32.totalorder %v224, %v258
        %vm261 = vcmp.eq.s32.totalorder %v225, %v257
        %vm262 = vcmp.eq.s32.totalorder %v225, %v258
        %vm263 = vcmp.eq.s32.totalorder %v226, %v257
        %vm264 = vcmp.eq.s32.totalorder %v226, %v258
        %vm265 = vcmp.eq.s32.totalorder %v227, %v257
        %vm266 = vcmp.eq.s32.totalorder %v227, %v258
        %vm267 = vcmp.eq.s32.totalorder %v228, %v257
        %vm268 = vcmp.eq.s32.totalorder %v228, %v258
        %vm269 = vcmp.eq.s32.totalorder %v229, %v257
        %vm270 = vcmp.eq.s32.totalorder %v229, %v258
        %vm271 = vcmp.eq.s32.totalorder %v230, %v257
        %vm272 = vcmp.eq.s32.totalorder %v230, %v258
        %vm273 = vcmp.eq.s32.totalorder %v231, %v257
        %vm274 = vcmp.eq.s32.totalorder %v231, %v258
        %vm275 = vcmp.eq.s32.totalorder %v232, %v257
        %vm276 = vcmp.eq.s32.totalorder %v232, %v258
        %vm277 = vcmp.eq.s32.totalorder %v233, %v257
        %vm278 = vcmp.eq.s32.totalorder %v233, %v258
        %vm279 = vcmp.eq.s32.totalorder %v234, %v257
        %vm280 = vcmp.eq.s32.totalorder %v234, %v258
        %vm281 = vcmp.eq.s32.totalorder %v235, %v257
        %vm282 = vcmp.eq.s32.totalorder %v235, %v258
        %vm283 = vcmp.eq.s32.totalorder %v236, %v257
        %vm284 = vcmp.eq.s32.totalorder %v236, %v258
        %vm285 = vcmp.eq.s32.totalorder %v237, %v257
        %vm286 = vcmp.eq.s32.totalorder %v237, %v258
        %vm287 = vcmp.eq.s32.totalorder %v238, %v257
        %vm288 = vcmp.eq.s32.totalorder %v238, %v258
        %vm289 = vcmp.eq.s32.totalorder %v239, %v257
        %vm290 = vcmp.eq.s32.totalorder %v239, %v258
        %vm291 = vcmp.eq.s32.totalorder %v240, %v257
        %vm292 = vcmp.eq.s32.totalorder %v240, %v258
        %vm293 = vcmp.eq.s32.totalorder %v241, %v257
        %vm294 = vcmp.eq.s32.totalorder %v241, %v258
        %vm295 = vcmp.eq.s32.totalorder %v242, %v257
        %vm296 = vcmp.eq.s32.totalorder %v242, %v258
        %vm297 = vcmp.eq.s32.totalorder %v243, %v257
        %vm298 = vcmp.eq.s32.totalorder %v243, %v258
        %vm299 = vcmp.eq.s32.totalorder %v244, %v257
        %vm300 = vcmp.eq.s32.totalorder %v244, %v258
        %vm301 = vcmp.eq.s32.totalorder %v245, %v257
        %vm302 = vcmp.eq.s32.totalorder %v245, %v258
        %vm303 = vcmp.eq.s32.totalorder %v246, %v257
        %vm304 = vcmp.eq.s32.totalorder %v246, %v258
        %vm305 = vcmp.eq.s32.totalorder %v247, %v257
        %vm306 = vcmp.eq.s32.totalorder %v247, %v258
        %vm307 = vcmp.eq.s32.totalorder %v248, %v257
        %vm308 = vcmp.eq.s32.totalorder %v248, %v258
        %vm309 = vcmp.eq.s32.totalorder %v249, %v257
        %vm310 = vcmp.eq.s32.totalorder %v249, %v258
        %vm311 = vcmp.eq.s32.totalorder %v250, %v257
        %vm312 = vcmp.eq.s32.totalorder %v250, %v258
        %vm313 = vcmp.eq.s32.totalorder %v251, %v257
        %vm314 = vcmp.eq.s32.totalorder %v251, %v258
        %vm315 = vcmp.eq.s32.totalorder %v252, %v257
        %vm316 = vcmp.eq.s32.totalorder %v252, %v258
        %vm317 = vcmp.eq.s32.totalorder %v253, %v257
        %vm318 = vcmp.eq.s32.totalorder %v253, %v258
        %vm319 = vcmp.eq.s32.totalorder %v254, %v257
        %vm320 = vcmp.eq.s32.totalorder %v254, %v258
        %vm321 = vcmp.eq.s32.totalorder %v255, %v257
        %vm322 = vcmp.eq.s32.totalorder %v255, %v258
        %v323 = vsel %vm259, 1, 0
        %v324 = vsel %vm260, 1, 0
        %v325 = vsel %vm261, 1, 0
        %v326 = vsel %vm262, 1, 0
        %v327 = vsel %vm263, 1, 0
        %v328 = vsel %vm264, 1, 0
        %v329 = vsel %vm265, 1, 0
        %v330 = vsel %vm266, 1, 0
        %v331 = vsel %vm267, 1, 0
        %v332 = vsel %vm268, 1, 0
        %v333 = vsel %vm269, 1, 0
        %v334 = vsel %vm270, 1, 0
        %v335 = vsel %vm271, 1, 0
        %v336 = vsel %vm272, 1, 0
        %v337 = vsel %vm273, 1, 0
        %v338 = vsel %vm274, 1, 0
        %v339 = vsel %vm275, 1, 0
        %v340 = vsel %vm276, 1, 0
        %v341 = vsel %vm277, 1, 0
        %v342 = vsel %vm278, 1, 0
        %v343 = vsel %vm279, 1, 0
        %v344 = vsel %vm280, 1, 0
        %v345 = vsel %vm281, 1, 0
        %v346 = vsel %vm282, 1, 0
        %v347 = vsel %vm283, 1, 0
        %v348 = vsel %vm284, 1, 0
        %v349 = vsel %vm285, 1, 0
        %v350 = vsel %vm286, 1, 0
        %v351 = vsel %vm287, 1, 0
        %v352 = vsel %vm288, 1, 0
        %v353 = vsel %vm289, 1, 0
        %v354 = vsel %vm290, 1, 0
        %v355 = vsel %vm291, 1, 0
        %v356 = vsel %vm292, 1, 0
        %v357 = vsel %vm293, 1, 0
        %v358 = vsel %vm294, 1, 0
        %v359 = vsel %vm295, 1, 0
        %v360 = vsel %vm296, 1, 0
        %v361 = vsel %vm297, 1, 0
        %v362 = vsel %vm298, 1, 0
        %v363 = vsel %vm299, 1, 0
        %v364 = vsel %vm300, 1, 0
        %v365 = vsel %vm301, 1, 0
        %v366 = vsel %vm302, 1, 0
        %v367 = vsel %vm303, 1, 0
        %v368 = vsel %vm304, 1, 0
        %v369 = vsel %vm305, 1, 0
        %v370 = vsel %vm306, 1, 0
        %v371 = vsel %vm307, 1, 0
        %v372 = vsel %vm308, 1, 0
        %v373 = vsel %vm309, 1, 0
        %v374 = vsel %vm310, 1, 0
        %v375 = vsel %vm311, 1, 0
        %v376 = vsel %vm312, 1, 0
        %v377 = vsel %vm313, 1, 0
        %v378 = vsel %vm314, 1, 0
        %v379 = vsel %vm315, 1, 0
        %v380 = vsel %vm316, 1, 0
        %v381 = vsel %vm317, 1, 0
        %v382 = vsel %vm318, 1, 0
        %v383 = vsel %vm319, 1, 0
        %v384 = vsel %vm320, 1, 0
        %v385 = vsel %vm321, 1, 0
        %v386 = vsel %vm322, 1, 0
        %v387 = vcvt.s32.f32 %v323
        %v388 = vcvt.s32.f32 %v324
        %v389 = vcvt.s32.f32 %v325
        %v390 = vcvt.s32.f32 %v326
        %v391 = vcvt.s32.f32 %v327
        %v392 = vcvt.s32.f32 %v328
        %v393 = vcvt.s32.f32 %v329
        %v394 = vcvt.s32.f32 %v330
        %v395 = vcvt.s32.f32 %v331
        %v396 = vcvt.s32.f32 %v332
        %v397 = vcvt.s32.f32 %v333
        %v398 = vcvt.s32.f32 %v334
        %v399 = vcvt.s32.f32 %v335
        %v400 = vcvt.s32.f32 %v336
        %v401 = vcvt.s32.f32 %v337
        %v402 = vcvt.s32.f32 %v338
        %v403 = vcvt.s32.f32 %v339
        %v404 = vcvt.s32.f32 %v340
        %v405 = vcvt.s32.f32 %v341
        %v406 = vcvt.s32.f32 %v342
        %v407 = vcvt.s32.f32 %v343
        %v408 = vcvt.s32.f32 %v344
        %v409 = vcvt.s32.f32 %v345
        %v410 = vcvt.s32.f32 %v346
        %v411 = vcvt.s32.f32 %v347
        %v412 = vcvt.s32.f32 %v348
        %v413 = vcvt.s32.f32 %v349
        %v414 = vcvt.s32.f32 %v350
        %v415 = vcvt.s32.f32 %v351
        %v416 = vcvt.s32.f32 %v352
        %v417 = vcvt.s32.f32 %v353
        %v418 = vcvt.s32.f32 %v354
        %v419 = vcvt.s32.f32 %v355
        %v420 = vcvt.s32.f32 %v356
        %v421 = vcvt.s32.f32 %v357
        %v422 = vcvt.s32.f32 %v358
        %v423 = vcvt.s32.f32 %v359
        %v424 = vcvt.s32.f32 %v360
        %v425 = vcvt.s32.f32 %v361
        %v426 = vcvt.s32.f32 %v362
        %v427 = vcvt.s32.f32 %v363
        %v428 = vcvt.s32.f32 %v364
        %v429 = vcvt.s32.f32 %v365
        %v430 = vcvt.s32.f32 %v366
        %v431 = vcvt.s32.f32 %v367
        %v432 = vcvt.s32.f32 %v368
        %v433 = vcvt.s32.f32 %v369
        %v434 = vcvt.s32.f32 %v370
        %v435 = vcvt.s32.f32 %v371
        %v436 = vcvt.s32.f32 %v372
        %v437 = vcvt.s32.f32 %v373
        %v438 = vcvt.s32.f32 %v374
        %v439 = vcvt.s32.f32 %v375
        %v440 = vcvt.s32.f32 %v376
        %v441 = vcvt.s32.f32 %v377
        %v442 = vcvt.s32.f32 %v378
        %v443 = vcvt.s32.f32 %v379
        %v444 = vcvt.s32.f32 %v380
        %v445 = vcvt.s32.f32 %v381
        %v446 = vcvt.s32.f32 %v382
        %v447 = vcvt.s32.f32 %v383
        %v448 = vcvt.s32.f32 %v384
        %v449 = vcvt.s32.f32 %v385
        %v450 = vcvt.s32.f32 %v386
        %s451 = scalar_lea.vmem %s188, 1 [#allocation2]
        %v452 = vld [vmem:[%s451] ss:$2 sm:$0x3]
        %v453 = vperm.slane %v452, 0
        %v454 = vperm.slane %v452, 1
        %vm455 = vcmp.eq.s32.totalorder %v224, %v453
        %vm456 = vcmp.eq.s32.totalorder %v224, %v454
        %vm457 = vcmp.eq.s32.totalorder %v225, %v453
        %vm458 = vcmp.eq.s32.totalorder %v225, %v454
        %vm459 = vcmp.eq.s32.totalorder %v226, %v453
        %vm460 = vcmp.eq.s32.totalorder %v226, %v454
        %vm461 = vcmp.eq.s32.totalorder %v227, %v453
        %vm462 = vcmp.eq.s32.totalorder %v227, %v454
        %vm463 = vcmp.eq.s32.totalorder %v228, %v453
        %vm464 = vcmp.eq.s32.totalorder %v228, %v454
        %vm465 = vcmp.eq.s32.totalorder %v229, %v453
        %vm466 = vcmp.eq.s32.totalorder %v229, %v454
        %vm467 = vcmp.eq.s32.totalorder %v230, %v453
        %vm468 = vcmp.eq.s32.totalorder %v230, %v454
        %vm469 = vcmp.eq.s32.totalorder %v231, %v453
        %vm470 = vcmp.eq.s32.totalorder %v231, %v454
        %vm471 = vcmp.eq.s32.totalorder %v232, %v453
        %vm472 = vcmp.eq.s32.totalorder %v232, %v454
        %vm473 = vcmp.eq.s32.totalorder %v233, %v453
        %vm474 = vcmp.eq.s32.totalorder %v233, %v454
        %vm475 = vcmp.eq.s32.totalorder %v234, %v453
        %vm476 = vcmp.eq.s32.totalorder %v234, %v454
        %vm477 = vcmp.eq.s32.totalorder %v235, %v453
        %vm478 = vcmp.eq.s32.totalorder %v235, %v454
        %vm479 = vcmp.eq.s32.totalorder %v236, %v453
        %vm480 = vcmp.eq.s32.totalorder %v236, %v454
        %vm481 = vcmp.eq.s32.totalorder %v237, %v453
        %vm482 = vcmp.eq.s32.totalorder %v237, %v454
        %vm483 = vcmp.eq.s32.totalorder %v238, %v453
        %vm484 = vcmp.eq.s32.totalorder %v238, %v454
        %vm485 = vcmp.eq.s32.totalorder %v239, %v453
        %vm486 = vcmp.eq.s32.totalorder %v239, %v454
        %vm487 = vcmp.eq.s32.totalorder %v240, %v453
        %vm488 = vcmp.eq.s32.totalorder %v240, %v454
        %vm489 = vcmp.eq.s32.totalorder %v241, %v453
        %vm490 = vcmp.eq.s32.totalorder %v241, %v454
        %vm491 = vcmp.eq.s32.totalorder %v242, %v453
        %vm492 = vcmp.eq.s32.totalorder %v242, %v454
        %vm493 = vcmp.eq.s32.totalorder %v243, %v453
        %vm494 = vcmp.eq.s32.totalorder %v243, %v454
        %vm495 = vcmp.eq.s32.totalorder %v244, %v453
        %vm496 = vcmp.eq.s32.totalorder %v244, %v454
        %vm497 = vcmp.eq.s32.totalorder %v245, %v453
        %vm498 = vcmp.eq.s32.totalorder %v245, %v454
        %vm499 = vcmp.eq.s32.totalorder %v246, %v453
        %vm500 = vcmp.eq.s32.totalorder %v246, %v454
        %vm501 = vcmp.eq.s32.totalorder %v247, %v453
        %vm502 = vcmp.eq.s32.totalorder %v247, %v454
        %vm503 = vcmp.eq.s32.totalorder %v248, %v453
        %vm504 = vcmp.eq.s32.totalorder %v248, %v454
        %vm505 = vcmp.eq.s32.totalorder %v249, %v453
        %vm506 = vcmp.eq.s32.totalorder %v249, %v454
        %vm507 = vcmp.eq.s32.totalorder %v250, %v453
        %vm508 = vcmp.eq.s32.totalorder %v250, %v454
        %vm509 = vcmp.eq.s32.totalorder %v251, %v453
        %vm510 = vcmp.eq.s32.totalorder %v251, %v454
        %vm511 = vcmp.eq.s32.totalorder %v252, %v453
        %vm512 = vcmp.eq.s32.totalorder %v252, %v454
        %vm513 = vcmp.eq.s32.totalorder %v253, %v453
        %vm514 = vcmp.eq.s32.totalorder %v253, %v454
        %vm515 = vcmp.eq.s32.totalorder %v254, %v453
        %vm516 = vcmp.eq.s32.totalorder %v254, %v454
        %vm517 = vcmp.eq.s32.totalorder %v255, %v453
        %vm518 = vcmp.eq.s32.totalorder %v255, %v454
        %v519 = vsel %vm455, 1, 0
        %v520 = vsel %vm456, 1, 0
        %v521 = vsel %vm457, 1, 0
        %v522 = vsel %vm458, 1, 0
        %v523 = vsel %vm459, 1, 0
        %v524 = vsel %vm460, 1, 0
        %v525 = vsel %vm461, 1, 0
        %v526 = vsel %vm462, 1, 0
        %v527 = vsel %vm463, 1, 0
        %v528 = vsel %vm464, 1, 0
        %v529 = vsel %vm465, 1, 0
        %v530 = vsel %vm466, 1, 0
        %v531 = vsel %vm467, 1, 0
        %v532 = vsel %vm468, 1, 0
        %v533 = vsel %vm469, 1, 0
        %v534 = vsel %vm470, 1, 0
        %v535 = vsel %vm471, 1, 0
        %v536 = vsel %vm472, 1, 0
        %v537 = vsel %vm473, 1, 0
        %v538 = vsel %vm474, 1, 0
        %v539 = vsel %vm475, 1, 0
        %v540 = vsel %vm476, 1, 0
        %v541 = vsel %vm477, 1, 0
        %v542 = vsel %vm478, 1, 0
        %v543 = vsel %vm479, 1, 0
        %v544 = vsel %vm480, 1, 0
        %v545 = vsel %vm481, 1, 0
        %v546 = vsel %vm482, 1, 0
        %v547 = vsel %vm483, 1, 0
        %v548 = vsel %vm484, 1, 0
        %v549 = vsel %vm485, 1, 0
        %v550 = vsel %vm486, 1, 0
        %v551 = vsel %vm487, 1, 0
        %v552 = vsel %vm488, 1, 0
        %v553 = vsel %vm489, 1, 0
        %v554 = vsel %vm490, 1, 0
        %v555 = vsel %vm491, 1, 0
        %v556 = vsel %vm492, 1, 0
        %v557 = vsel %vm493, 1, 0
        %v558 = vsel %vm494, 1, 0
        %v559 = vsel %vm495, 1, 0
        %v560 = vsel %vm496, 1, 0
        %v561 = vsel %vm497, 1, 0
        %v562 = vsel %vm498, 1, 0
        %v563 = vsel %vm499, 1, 0
        %v564 = vsel %vm500, 1, 0
        %v565 = vsel %vm501, 1, 0
        %v566 = vsel %vm502, 1, 0
        %v567 = vsel %vm503, 1, 0
        %v568 = vsel %vm504, 1, 0
        %v569 = vsel %vm505, 1, 0
        %v570 = vsel %vm506, 1, 0
        %v571 = vsel %vm507, 1, 0
        %v572 = vsel %vm508, 1, 0
        %v573 = vsel %vm509, 1, 0
        %v574 = vsel %vm510, 1, 0
        %v575 = vsel %vm511, 1, 0
        %v576 = vsel %vm512, 1, 0
        %v577 = vsel %vm513, 1, 0
        %v578 = vsel %vm514, 1, 0
        %v579 = vsel %vm515, 1, 0
        %v580 = vsel %vm516, 1, 0
        %v581 = vsel %vm517, 1, 0
        %v582 = vsel %vm518, 1, 0
        %v583 = vcvt.s32.f32 %v519
        %v584 = vcvt.s32.f32 %v520
        %v585 = vcvt.s32.f32 %v521
        %v586 = vcvt.s32.f32 %v522
        %v587 = vcvt.s32.f32 %v523
        %v588 = vcvt.s32.f32 %v524
        %v589 = vcvt.s32.f32 %v525
        %v590 = vcvt.s32.f32 %v526
        %v591 = vcvt.s32.f32 %v527
        %v592 = vcvt.s32.f32 %v528
        %v593 = vcvt.s32.f32 %v529
        %v594 = vcvt.s32.f32 %v530
        %v595 = vcvt.s32.f32 %v531
        %v596 = vcvt.s32.f32 %v532
        %v597 = vcvt.s32.f32 %v533
        %v598 = vcvt.s32.f32 %v534
        %v599 = vcvt.s32.f32 %v535
        %v600 = vcvt.s32.f32 %v536
        %v601 = vcvt.s32.f32 %v537
        %v602 = vcvt.s32.f32 %v538
        %v603 = vcvt.s32.f32 %v539
        %v604 = vcvt.s32.f32 %v540
        %v605 = vcvt.s32.f32 %v541
        %v606 = vcvt.s32.f32 %v542
        %v607 = vcvt.s32.f32 %v543
        %v608 = vcvt.s32.f32 %v544
        %v609 = vcvt.s32.f32 %v545
        %v610 = vcvt.s32.f32 %v546
        %v611 = vcvt.s32.f32 %v547
        %v612 = vcvt.s32.f32 %v548
        %v613 = vcvt.s32.f32 %v549
        %v614 = vcvt.s32.f32 %v550
        %v615 = vcvt.s32.f32 %v551
        %v616 = vcvt.s32.f32 %v552
        %v617 = vcvt.s32.f32 %v553
        %v618 = vcvt.s32.f32 %v554
        %v619 = vcvt.s32.f32 %v555
        %v620 = vcvt.s32.f32 %v556
        %v621 = vcvt.s32.f32 %v557
        %v622 = vcvt.s32.f32 %v558
        %v623 = vcvt.s32.f32 %v559
        %v624 = vcvt.s32.f32 %v560
        %v625 = vcvt.s32.f32 %v561
        %v626 = vcvt.s32.f32 %v562
        %v627 = vcvt.s32.f32 %v563
        %v628 = vcvt.s32.f32 %v564
        %v629 = vcvt.s32.f32 %v565
        %v630 = vcvt.s32.f32 %v566
        %v631 = vcvt.s32.f32 %v567
        %v632 = vcvt.s32.f32 %v568
        %v633 = vcvt.s32.f32 %v569
        %v634 = vcvt.s32.f32 %v570
        %v635 = vcvt.s32.f32 %v571
        %v636 = vcvt.s32.f32 %v572
        %v637 = vcvt.s32.f32 %v573
        %v638 = vcvt.s32.f32 %v574
        %v639 = vcvt.s32.f32 %v575
        %v640 = vcvt.s32.f32 %v576
        %v641 = vcvt.s32.f32 %v577
        %v642 = vcvt.s32.f32 %v578
        %v643 = vcvt.s32.f32 %v579
        %v644 = vcvt.s32.f32 %v580
        %v645 = vcvt.s32.f32 %v581
        %v646 = vcvt.s32.f32 %v582
        %v647 = vld [vmem:[#allocation5] sm:$0xff]
        %v648 = vld [vmem:[#allocation5 + $0x8] sm:$0xff]
        %v649 = vld [vmem:[#allocation5 + $0x10] sm:$0xff]
        %v650 = vld [vmem:[#allocation5 + $0x18] sm:$0xff]
        %v651 = vld [vmem:[#allocation5 + $0x20] sm:$0xff]
        %v652 = vld [vmem:[#allocation5 + $0x28] sm:$0xff]
        %v653 = vld [vmem:[#allocation5 + $0x30] sm:$0xff]
        %v654 = vld [vmem:[#allocation5 + $0x38] sm:$0xff]
        %v655 = vld [vmem:[#allocation5 + $0x40] sm:$0xff]
        %v656 = vld [vmem:[#allocation5 + $0x48] sm:$0xff]
        %v657 = vld [vmem:[#allocation5 + $0x50] sm:$0xff]
        %v658 = vld [vmem:[#allocation5 + $0x58] sm:$0xff]
        %v659 = vld [vmem:[#allocation5 + $0x60] sm:$0xff]
        %v660 = vld [vmem:[#allocation5 + $0x68] sm:$0xff]
        %v661 = vld [vmem:[#allocation5 + $0x70] sm:$0xff]
        %v662 = vld [vmem:[#allocation5 + $0x78] sm:$0xff]
        %v663 = vld [vmem:[#allocation5 + $0x80] sm:$0xff]
        %v664 = vld [vmem:[#allocation5 + $0x88] sm:$0xff]
        %v665 = vld [vmem:[#allocation5 + $0x90] sm:$0xff]
        %v666 = vld [vmem:[#allocation5 + $0x98] sm:$0xff]
        %v667 = vld [vmem:[#allocation5 + $0xa0] sm:$0xff]
        %v668 = vld [vmem:[#allocation5 + $0xa8] sm:$0xff]
        %v669 = vld [vmem:[#allocation5 + $0xb0] sm:$0xff]
        %v670 = vld [vmem:[#allocation5 + $0xb8] sm:$0xff]
        %v671 = vld [vmem:[#allocation5 + $0xc0] sm:$0xff]
        %v672 = vld [vmem:[#allocation5 + $0xc8] sm:$0xff]
        %v673 = vld [vmem:[#allocation5 + $0xd0] sm:$0xff]
        %v674 = vld [vmem:[#allocation5 + $0xd8] sm:$0xff]
        %v675 = vld [vmem:[#allocation5 + $0xe0] sm:$0xff]
        %v676 = vld [vmem:[#allocation5 + $0xe8] sm:$0xff]
        %v677 = vld [vmem:[#allocation5 + $0xf0] sm:$0xff]
        %v678 = vld [vmem:[#allocation5 + $0xf8] sm:$0xff]
        %679 = vmatpush.msra.mxu0 %v417
        %680 = vmatpush.msra.mxu0 %v415
        %681 = vmatpush.msra.mxu0 %v413
        %682 = vmatpush.msra.mxu0 %v411
        %683 = vmatpush.msra.mxu0 %v409
        %684 = vmatpush.msra.mxu0 %v407
        %685 = vmatpush.msra.mxu0 %v405
        %686 = vmatpush.msra.mxu0 %v403
        %687 = vmatpush.msra.mxu0 %v401
        %688 = vmatpush.msra.mxu0 %v399
        %689 = vmatpush.msra.mxu0 %v397
        %690 = vmatpush.msra.mxu0 %v395
        %691 = vmatpush.msra.mxu0 %v393
        %692 = vmatpush.msra.mxu0 %v391
        %693 = vmatpush.msra.mxu0 %v389
        %694 = vmatpush.msra.mxu0 %v387
        %695 = vmatmul.f32.gmra.mxu0 %v647
        %v696 = vpop.f32.mrf.mxu0
        %v697 = vadd.f32 0.0, %v696
        %698 = vmatmul.f32.gmra.mxu0 %v649
        %v699 = vpop.f32.mrf.mxu0
        %v700 = vadd.f32 0.0, %v699
        %701 = vmatmul.f32.gmra.mxu0 %v651
        %v702 = vpop.f32.mrf.mxu0
        %v703 = vadd.f32 0.0, %v702
        %704 = vmatmul.f32.gmra.mxu0 %v653
        %v705 = vpop.f32.mrf.mxu0
        %v706 = vadd.f32 0.0, %v705
        %707 = vmatmul.f32.gmra.mxu0 %v655
        %v708 = vpop.f32.mrf.mxu0
        %v709 = vadd.f32 0.0, %v708
        %710 = vmatmul.f32.gmra.mxu0 %v657
        %v711 = vpop.f32.mrf.mxu0
        %v712 = vadd.f32 0.0, %v711
        %713 = vmatmul.f32.gmra.mxu0 %v659
        %v714 = vpop.f32.mrf.mxu0
        %v715 = vadd.f32 0.0, %v714
        %716 = vmatmul.f32.gmra.mxu0 %v661
        %v717 = vpop.f32.mrf.mxu0
        %v718 = vadd.f32 0.0, %v717
        %719 = vmatmul.f32.gmra.mxu0 %v663
        %v720 = vpop.f32.mrf.mxu0
        %v721 = vadd.f32 0.0, %v720
        %722 = vmatmul.f32.gmra.mxu0 %v665
        %v723 = vpop.f32.mrf.mxu0
        %v724 = vadd.f32 0.0, %v723
        %725 = vmatmul.f32.gmra.mxu0 %v667
        %v726 = vpop.f32.mrf.mxu0
        %v727 = vadd.f32 0.0, %v726
        %728 = vmatmul.f32.gmra.mxu0 %v669
        %v729 = vpop.f32.mrf.mxu0
        %v730 = vadd.f32 0.0, %v729
        %731 = vmatmul.f32.gmra.mxu0 %v671
        %v732 = vpop.f32.mrf.mxu0
        %v733 = vadd.f32 0.0, %v732
        %734 = vmatmul.f32.gmra.mxu0 %v673
        %v735 = vpop.f32.mrf.mxu0
        %v736 = vadd.f32 0.0, %v735
        %737 = vmatmul.f32.gmra.mxu0 %v675
        %v738 = vpop.f32.mrf.mxu0
        %v739 = vadd.f32 0.0, %v738
        %740 = vmatmul.f32.gmra.mxu0 %v677
        %v741 = vpop.f32.mrf.mxu0
        %v742 = vadd.f32 0.0, %v741
        %743 = vdwg.mxu0
        %744 = vmatpush.msra.mxu0 %v449
        %745 = vmatpush.msra.mxu0 %v447
        %746 = vmatpush.msra.mxu0 %v445
        %747 = vmatpush.msra.mxu0 %v443
        %748 = vmatpush.msra.mxu0 %v441
        %749 = vmatpush.msra.mxu0 %v439
        %750 = vmatpush.msra.mxu0 %v437
        %751 = vmatpush.msra.mxu0 %v435
        %752 = vmatpush.msra.mxu0 %v433
        %753 = vmatpush.msra.mxu0 %v431
        %754 = vmatpush.msra.mxu0 %v429
        %755 = vmatpush.msra.mxu0 %v427
        %756 = vmatpush.msra.mxu0 %v425
        %757 = vmatpush.msra.mxu0 %v423
        %758 = vmatpush.msra.mxu0 %v421
        %759 = vmatpush.msra.mxu0 %v419
        %760 = vmatmul.f32.gmra.mxu0 %v648
        %v761 = vpop.f32.mrf.mxu0
        %v762 = vadd.f32 %v697, %v761
        %763 = vmatmul.f32.gmra.mxu0 %v650
        %v764 = vpop.f32.mrf.mxu0
        %v765 = vadd.f32 %v700, %v764
        %766 = vmatmul.f32.gmra.mxu0 %v652
        %v767 = vpop.f32.mrf.mxu0
        %v768 = vadd.f32 %v703, %v767
        %769 = vmatmul.f32.gmra.mxu0 %v654
        %v770 = vpop.f32.mrf.mxu0
        %v771 = vadd.f32 %v706, %v770
        %772 = vmatmul.f32.gmra.mxu0 %v656
        %v773 = vpop.f32.mrf.mxu0
        %v774 = vadd.f32 %v709, %v773
        %775 = vmatmul.f32.gmra.mxu0 %v658
        %v776 = vpop.f32.mrf.mxu0
        %v777 = vadd.f32 %v712, %v776
        %778 = vmatmul.f32.gmra.mxu0 %v660
        %v779 = vpop.f32.mrf.mxu0
        %v780 = vadd.f32 %v715, %v779
        %781 = vmatmul.f32.gmra.mxu0 %v662
        %v782 = vpop.f32.mrf.mxu0
        %v783 = vadd.f32 %v718, %v782
        %784 = vmatmul.f32.gmra.mxu0 %v664
        %v785 = vpop.f32.mrf.mxu0
        %v786 = vadd.f32 %v721, %v785
        %787 = vmatmul.f32.gmra.mxu0 %v666
        %v788 = vpop.f32.mrf.mxu0
        %v789 = vadd.f32 %v724, %v788
        %790 = vmatmul.f32.gmra.mxu0 %v668
        %v791 = vpop.f32.mrf.mxu0
        %v792 = vadd.f32 %v727, %v791
        %793 = vmatmul.f32.gmra.mxu0 %v670
        %v794 = vpop.f32.mrf.mxu0
        %v795 = vadd.f32 %v730, %v794
        %796 = vmatmul.f32.gmra.mxu0 %v672
        %v797 = vpop.f32.mrf.mxu0
        %v798 = vadd.f32 %v733, %v797
        %799 = vmatmul.f32.gmra.mxu0 %v674
        %v800 = vpop.f32.mrf.mxu0
        %v801 = vadd.f32 %v736, %v800
        %802 = vmatmul.f32.gmra.mxu0 %v676
        %v803 = vpop.f32.mrf.mxu0
        %v804 = vadd.f32 %v739, %v803
        %805 = vmatmul.f32.gmra.mxu0 %v678
        %v806 = vpop.f32.mrf.mxu0
        %v807 = vadd.f32 %v742, %v806
        %808 = vdwg.mxu0
        %809 = vmatpush.msra.mxu0 %v418
        %810 = vmatpush.msra.mxu0 %v416
        %811 = vmatpush.msra.mxu0 %v414
        %812 = vmatpush.msra.mxu0 %v412
        %813 = vmatpush.msra.mxu0 %v410
        %814 = vmatpush.msra.mxu0 %v408
        %815 = vmatpush.msra.mxu0 %v406
        %816 = vmatpush.msra.mxu0 %v404
        %817 = vmatpush.msra.mxu0 %v402
        %818 = vmatpush.msra.mxu0 %v400
        %819 = vmatpush.msra.mxu0 %v398
        %820 = vmatpush.msra.mxu0 %v396
        %821 = vmatpush.msra.mxu0 %v394
        %822 = vmatpush.msra.mxu0 %v392
        %823 = vmatpush.msra.mxu0 %v390
        %824 = vmatpush.msra.mxu0 %v388
        %825 = vmatmul.f32.gmra.mxu0 %v647
        %v826 = vpop.f32.mrf.mxu0
        %v827 = vadd.f32 0.0, %v826
        %828 = vmatmul.f32.gmra.mxu0 %v649
        %v829 = vpop.f32.mrf.mxu0
        %v830 = vadd.f32 0.0, %v829
        %831 = vmatmul.f32.gmra.mxu0 %v651
        %v832 = vpop.f32.mrf.mxu0
        %v833 = vadd.f32 0.0, %v832
        %834 = vmatmul.f32.gmra.mxu0 %v653
        %v835 = vpop.f32.mrf.mxu0
        %v836 = vadd.f32 0.0, %v835
        %837 = vmatmul.f32.gmra.mxu0 %v655
        %v838 = vpop.f32.mrf.mxu0
        %v839 = vadd.f32 0.0, %v838
        %840 = vmatmul.f32.gmra.mxu0 %v657
        %v841 = vpop.f32.mrf.mxu0
        %v842 = vadd.f32 0.0, %v841
        %843 = vmatmul.f32.gmra.mxu0 %v659
        %v844 = vpop.f32.mrf.mxu0
        %v845 = vadd.f32 0.0, %v844
        %846 = vmatmul.f32.gmra.mxu0 %v661
        %v847 = vpop.f32.mrf.mxu0
        %v848 = vadd.f32 0.0, %v847
        %849 = vmatmul.f32.gmra.mxu0 %v663
        %v850 = vpop.f32.mrf.mxu0
        %v851 = vadd.f32 0.0, %v850
        %852 = vmatmul.f32.gmra.mxu0 %v665
        %v853 = vpop.f32.mrf.mxu0
        %v854 = vadd.f32 0.0, %v853
        %855 = vmatmul.f32.gmra.mxu0 %v667
        %v856 = vpop.f32.mrf.mxu0
        %v857 = vadd.f32 0.0, %v856
        %858 = vmatmul.f32.gmra.mxu0 %v669
        %v859 = vpop.f32.mrf.mxu0
        %v860 = vadd.f32 0.0, %v859
        %861 = vmatmul.f32.gmra.mxu0 %v671
        %v862 = vpop.f32.mrf.mxu0
        %v863 = vadd.f32 0.0, %v862
        %864 = vmatmul.f32.gmra.mxu0 %v673
        %v865 = vpop.f32.mrf.mxu0
        %v866 = vadd.f32 0.0, %v865
        %867 = vmatmul.f32.gmra.mxu0 %v675
        %v868 = vpop.f32.mrf.mxu0
        %v869 = vadd.f32 0.0, %v868
        %870 = vmatmul.f32.gmra.mxu0 %v677
        %v871 = vpop.f32.mrf.mxu0
        %v872 = vadd.f32 0.0, %v871
        %873 = vdwg.mxu0
        %874 = vmatpush.msra.mxu0 %v450
        %875 = vmatpush.msra.mxu0 %v448
        %876 = vmatpush.msra.mxu0 %v446
        %877 = vmatpush.msra.mxu0 %v444
        %878 = vmatpush.msra.mxu0 %v442
        %879 = vmatpush.msra.mxu0 %v440
        %880 = vmatpush.msra.mxu0 %v438
        %881 = vmatpush.msra.mxu0 %v436
        %882 = vmatpush.msra.mxu0 %v434
        %883 = vmatpush.msra.mxu0 %v432
        %884 = vmatpush.msra.mxu0 %v430
        %885 = vmatpush.msra.mxu0 %v428
        %886 = vmatpush.msra.mxu0 %v426
        %887 = vmatpush.msra.mxu0 %v424
        %888 = vmatpush.msra.mxu0 %v422
        %889 = vmatpush.msra.mxu0 %v420
        %890 = vmatmul.f32.gmra.mxu0 %v648
        %v891 = vpop.f32.mrf.mxu0
        %v892 = vadd.f32 %v827, %v891
        %893 = vmatmul.f32.gmra.mxu0 %v650
        %v894 = vpop.f32.mrf.mxu0
        %v895 = vadd.f32 %v830, %v894
        %896 = vmatmul.f32.gmra.mxu0 %v652
        %v897 = vpop.f32.mrf.mxu0
        %v898 = vadd.f32 %v833, %v897
        %899 = vmatmul.f32.gmra.mxu0 %v654
        %v900 = vpop.f32.mrf.mxu0
        %v901 = vadd.f32 %v836, %v900
        %902 = vmatmul.f32.gmra.mxu0 %v656
        %v903 = vpop.f32.mrf.mxu0
        %v904 = vadd.f32 %v839, %v903
        %905 = vmatmul.f32.gmra.mxu0 %v658
        %v906 = vpop.f32.mrf.mxu0
        %v907 = vadd.f32 %v842, %v906
        %908 = vmatmul.f32.gmra.mxu0 %v660
        %v909 = vpop.f32.mrf.mxu0
        %v910 = vadd.f32 %v845, %v909
        %911 = vmatmul.f32.gmra.mxu0 %v662
        %v912 = vpop.f32.mrf.mxu0
        %v913 = vadd.f32 %v848, %v912
        %914 = vmatmul.f32.gmra.mxu0 %v664
        %v915 = vpop.f32.mrf.mxu0
        %v916 = vadd.f32 %v851, %v915
        %917 = vmatmul.f32.gmra.mxu0 %v666
        %v918 = vpop.f32.mrf.mxu0
        %v919 = vadd.f32 %v854, %v918
        %920 = vmatmul.f32.gmra.mxu0 %v668
        %v921 = vpop.f32.mrf.mxu0
        %v922 = vadd.f32 %v857, %v921
        %923 = vmatmul.f32.gmra.mxu0 %v670
        %v924 = vpop.f32.mrf.mxu0
        %v925 = vadd.f32 %v860, %v924
        %926 = vmatmul.f32.gmra.mxu0 %v672
        %v927 = vpop.f32.mrf.mxu0
        %v928 = vadd.f32 %v863, %v927
        %929 = vmatmul.f32.gmra.mxu0 %v674
        %v930 = vpop.f32.mrf.mxu0
        %v931 = vadd.f32 %v866, %v930
        %932 = vmatmul.f32.gmra.mxu0 %v676
        %v933 = vpop.f32.mrf.mxu0
        %v934 = vadd.f32 %v869, %v933
        %935 = vmatmul.f32.gmra.mxu0 %v678
        %v936 = vpop.f32.mrf.mxu0
        %v937 = vadd.f32 %v872, %v936
        %938 = vdwg.mxu0
        %v939 = vld [vmem:[#allocation7] sm:$0xff]
        %v940 = vld [vmem:[#allocation7 + $0x8] sm:$0xff]
        %v941 = vld [vmem:[#allocation7 + $0x10] sm:$0xff]
        %v942 = vld [vmem:[#allocation7 + $0x18] sm:$0xff]
        %v943 = vld [vmem:[#allocation7 + $0x20] sm:$0xff]
        %v944 = vld [vmem:[#allocation7 + $0x28] sm:$0xff]
        %v945 = vld [vmem:[#allocation7 + $0x30] sm:$0xff]
        %v946 = vld [vmem:[#allocation7 + $0x38] sm:$0xff]
        %v947 = vld [vmem:[#allocation7 + $0x40] sm:$0xff]
        %v948 = vld [vmem:[#allocation7 + $0x48] sm:$0xff]
        %v949 = vld [vmem:[#allocation7 + $0x50] sm:$0xff]
        %v950 = vld [vmem:[#allocation7 + $0x58] sm:$0xff]
        %v951 = vld [vmem:[#allocation7 + $0x60] sm:$0xff]
        %v952 = vld [vmem:[#allocation7 + $0x68] sm:$0xff]
        %v953 = vld [vmem:[#allocation7 + $0x70] sm:$0xff]
        %v954 = vld [vmem:[#allocation7 + $0x78] sm:$0xff]
        %v955 = vld [vmem:[#allocation7 + $0x80] sm:$0xff]
        %v956 = vld [vmem:[#allocation7 + $0x88] sm:$0xff]
        %v957 = vld [vmem:[#allocation7 + $0x90] sm:$0xff]
        %v958 = vld [vmem:[#allocation7 + $0x98] sm:$0xff]
        %v959 = vld [vmem:[#allocation7 + $0xa0] sm:$0xff]
        %v960 = vld [vmem:[#allocation7 + $0xa8] sm:$0xff]
        %v961 = vld [vmem:[#allocation7 + $0xb0] sm:$0xff]
        %v962 = vld [vmem:[#allocation7 + $0xb8] sm:$0xff]
        %v963 = vld [vmem:[#allocation7 + $0xc0] sm:$0xff]
        %v964 = vld [vmem:[#allocation7 + $0xc8] sm:$0xff]
        %v965 = vld [vmem:[#allocation7 + $0xd0] sm:$0xff]
        %v966 = vld [vmem:[#allocation7 + $0xd8] sm:$0xff]
        %v967 = vld [vmem:[#allocation7 + $0xe0] sm:$0xff]
        %v968 = vld [vmem:[#allocation7 + $0xe8] sm:$0xff]
        %v969 = vld [vmem:[#allocation7 + $0xf0] sm:$0xff]
        %v970 = vld [vmem:[#allocation7 + $0xf8] sm:$0xff]
        %971 = vmatpush.msra.mxu0 %v613
        %972 = vmatpush.msra.mxu0 %v611
        %973 = vmatpush.msra.mxu0 %v609
        %974 = vmatpush.msra.mxu0 %v607
        %975 = vmatpush.msra.mxu0 %v605
        %976 = vmatpush.msra.mxu0 %v603
        %977 = vmatpush.msra.mxu0 %v601
        %978 = vmatpush.msra.mxu0 %v599
        %979 = vmatpush.msra.mxu0 %v597
        %980 = vmatpush.msra.mxu0 %v595
        %981 = vmatpush.msra.mxu0 %v593
        %982 = vmatpush.msra.mxu0 %v591
        %983 = vmatpush.msra.mxu0 %v589
        %984 = vmatpush.msra.mxu0 %v587
        %985 = vmatpush.msra.mxu0 %v585
        %986 = vmatpush.msra.mxu0 %v583
        %987 = vmatmul.f32.gmra.mxu0 %v939
        %v988 = vpop.f32.mrf.mxu0
        %v989 = vadd.f32 0.0, %v988
        %990 = vmatmul.f32.gmra.mxu0 %v941
        %v991 = vpop.f32.mrf.mxu0
        %v992 = vadd.f32 0.0, %v991
        %993 = vmatmul.f32.gmra.mxu0 %v943
        %v994 = vpop.f32.mrf.mxu0
        %v995 = vadd.f32 0.0, %v994
        %996 = vmatmul.f32.gmra.mxu0 %v945
        %v997 = vpop.f32.mrf.mxu0
        %v998 = vadd.f32 0.0, %v997
        %999 = vmatmul.f32.gmra.mxu0 %v947
        %v1000 = vpop.f32.mrf.mxu0
        %v1001 = vadd.f32 0.0, %v1000
        %1002 = vmatmul.f32.gmra.mxu0 %v949
        %v1003 = vpop.f32.mrf.mxu0
        %v1004 = vadd.f32 0.0, %v1003
        %1005 = vmatmul.f32.gmra.mxu0 %v951
        %v1006 = vpop.f32.mrf.mxu0
        %v1007 = vadd.f32 0.0, %v1006
        %1008 = vmatmul.f32.gmra.mxu0 %v953
        %v1009 = vpop.f32.mrf.mxu0
        %v1010 = vadd.f32 0.0, %v1009
        %1011 = vmatmul.f32.gmra.mxu0 %v955
        %v1012 = vpop.f32.mrf.mxu0
        %v1013 = vadd.f32 0.0, %v1012
        %1014 = vmatmul.f32.gmra.mxu0 %v957
        %v1015 = vpop.f32.mrf.mxu0
        %v1016 = vadd.f32 0.0, %v1015
        %1017 = vmatmul.f32.gmra.mxu0 %v959
        %v1018 = vpop.f32.mrf.mxu0
        %v1019 = vadd.f32 0.0, %v1018
        %1020 = vmatmul.f32.gmra.mxu0 %v961
        %v1021 = vpop.f32.mrf.mxu0
        %v1022 = vadd.f32 0.0, %v1021
        %1023 = vmatmul.f32.gmra.mxu0 %v963
        %v1024 = vpop.f32.mrf.mxu0
        %v1025 = vadd.f32 0.0, %v1024
        %1026 = vmatmul.f32.gmra.mxu0 %v965
        %v1027 = vpop.f32.mrf.mxu0
        %v1028 = vadd.f32 0.0, %v1027
        %1029 = vmatmul.f32.gmra.mxu0 %v967
        %v1030 = vpop.f32.mrf.mxu0
        %v1031 = vadd.f32 0.0, %v1030
        %1032 = vmatmul.f32.gmra.mxu0 %v969
        %v1033 = vpop.f32.mrf.mxu0
        %v1034 = vadd.f32 0.0, %v1033
        %1035 = vdwg.mxu0
        %1036 = vmatpush.msra.mxu0 %v645
        %1037 = vmatpush.msra.mxu0 %v643
        %1038 = vmatpush.msra.mxu0 %v641
        %1039 = vmatpush.msra.mxu0 %v639
        %1040 = vmatpush.msra.mxu0 %v637
        %1041 = vmatpush.msra.mxu0 %v635
        %1042 = vmatpush.msra.mxu0 %v633
        %1043 = vmatpush.msra.mxu0 %v631
        %1044 = vmatpush.msra.mxu0 %v629
        %1045 = vmatpush.msra.mxu0 %v627
        %1046 = vmatpush.msra.mxu0 %v625
        %1047 = vmatpush.msra.mxu0 %v623
        %1048 = vmatpush.msra.mxu0 %v621
        %1049 = vmatpush.msra.mxu0 %v619
        %1050 = vmatpush.msra.mxu0 %v617
        %1051 = vmatpush.msra.mxu0 %v615
        %1052 = vmatmul.f32.gmra.mxu0 %v940
        %v1053 = vpop.f32.mrf.mxu0
        %v1054 = vadd.f32 %v989, %v1053
        %1055 = vmatmul.f32.gmra.mxu0 %v942
        %v1056 = vpop.f32.mrf.mxu0
        %v1057 = vadd.f32 %v992, %v1056
        %1058 = vmatmul.f32.gmra.mxu0 %v944
        %v1059 = vpop.f32.mrf.mxu0
        %v1060 = vadd.f32 %v995, %v1059
        %1061 = vmatmul.f32.gmra.mxu0 %v946
        %v1062 = vpop.f32.mrf.mxu0
        %v1063 = vadd.f32 %v998, %v1062
        %1064 = vmatmul.f32.gmra.mxu0 %v948
        %v1065 = vpop.f32.mrf.mxu0
        %v1066 = vadd.f32 %v1001, %v1065
        %1067 = vmatmul.f32.gmra.mxu0 %v950
        %v1068 = vpop.f32.mrf.mxu0
        %v1069 = vadd.f32 %v1004, %v1068
        %1070 = vmatmul.f32.gmra.mxu0 %v952
        %v1071 = vpop.f32.mrf.mxu0
        %v1072 = vadd.f32 %v1007, %v1071
        %1073 = vmatmul.f32.gmra.mxu0 %v954
        %v1074 = vpop.f32.mrf.mxu0
        %v1075 = vadd.f32 %v1010, %v1074
        %1076 = vmatmul.f32.gmra.mxu0 %v956
        %v1077 = vpop.f32.mrf.mxu0
        %v1078 = vadd.f32 %v1013, %v1077
        %1079 = vmatmul.f32.gmra.mxu0 %v958
        %v1080 = vpop.f32.mrf.mxu0
        %v1081 = vadd.f32 %v1016, %v1080
        %1082 = vmatmul.f32.gmra.mxu0 %v960
        %v1083 = vpop.f32.mrf.mxu0
        %v1084 = vadd.f32 %v1019, %v1083
        %1085 = vmatmul.f32.gmra.mxu0 %v962
        %v1086 = vpop.f32.mrf.mxu0
        %v1087 = vadd.f32 %v1022, %v1086
        %1088 = vmatmul.f32.gmra.mxu0 %v964
        %v1089 = vpop.f32.mrf.mxu0
        %v1090 = vadd.f32 %v1025, %v1089
        %1091 = vmatmul.f32.gmra.mxu0 %v966
        %v1092 = vpop.f32.mrf.mxu0
        %v1093 = vadd.f32 %v1028, %v1092
        %1094 = vmatmul.f32.gmra.mxu0 %v968
        %v1095 = vpop.f32.mrf.mxu0
        %v1096 = vadd.f32 %v1031, %v1095
        %1097 = vmatmul.f32.gmra.mxu0 %v970
        %v1098 = vpop.f32.mrf.mxu0
        %v1099 = vadd.f32 %v1034, %v1098
        %1100 = vdwg.mxu0
        %1101 = vmatpush.msra.mxu0 %v614
        %1102 = vmatpush.msra.mxu0 %v612
        %1103 = vmatpush.msra.mxu0 %v610
        %1104 = vmatpush.msra.mxu0 %v608
        %1105 = vmatpush.msra.mxu0 %v606
        %1106 = vmatpush.msra.mxu0 %v604
        %1107 = vmatpush.msra.mxu0 %v602
        %1108 = vmatpush.msra.mxu0 %v600
        %1109 = vmatpush.msra.mxu0 %v598
        %1110 = vmatpush.msra.mxu0 %v596
        %1111 = vmatpush.msra.mxu0 %v594
        %1112 = vmatpush.msra.mxu0 %v592
        %1113 = vmatpush.msra.mxu0 %v590
        %1114 = vmatpush.msra.mxu0 %v588
        %1115 = vmatpush.msra.mxu0 %v586
        %1116 = vmatpush.msra.mxu0 %v584
        %1117 = vmatmul.f32.gmra.mxu0 %v939
        %v1118 = vpop.f32.mrf.mxu0
        %v1119 = vadd.f32 0.0, %v1118
        %1120 = vmatmul.f32.gmra.mxu0 %v941
        %v1121 = vpop.f32.mrf.mxu0
        %v1122 = vadd.f32 0.0, %v1121
        %1123 = vmatmul.f32.gmra.mxu0 %v943
        %v1124 = vpop.f32.mrf.mxu0
        %v1125 = vadd.f32 0.0, %v1124
        %1126 = vmatmul.f32.gmra.mxu0 %v945
        %v1127 = vpop.f32.mrf.mxu0
        %v1128 = vadd.f32 0.0, %v1127
        %1129 = vmatmul.f32.gmra.mxu0 %v947
        %v1130 = vpop.f32.mrf.mxu0
        %v1131 = vadd.f32 0.0, %v1130
        %1132 = vmatmul.f32.gmra.mxu0 %v949
        %v1133 = vpop.f32.mrf.mxu0
        %v1134 = vadd.f32 0.0, %v1133
        %1135 = vmatmul.f32.gmra.mxu0 %v951
        %v1136 = vpop.f32.mrf.mxu0
        %v1137 = vadd.f32 0.0, %v1136
        %1138 = vmatmul.f32.gmra.mxu0 %v953
        %v1139 = vpop.f32.mrf.mxu0
        %v1140 = vadd.f32 0.0, %v1139
        %1141 = vmatmul.f32.gmra.mxu0 %v955
        %v1142 = vpop.f32.mrf.mxu0
        %v1143 = vadd.f32 0.0, %v1142
        %1144 = vmatmul.f32.gmra.mxu0 %v957
        %v1145 = vpop.f32.mrf.mxu0
        %v1146 = vadd.f32 0.0, %v1145
        %1147 = vmatmul.f32.gmra.mxu0 %v959
        %v1148 = vpop.f32.mrf.mxu0
        %v1149 = vadd.f32 0.0, %v1148
        %1150 = vmatmul.f32.gmra.mxu0 %v961
        %v1151 = vpop.f32.mrf.mxu0
        %v1152 = vadd.f32 0.0, %v1151
        %1153 = vmatmul.f32.gmra.mxu0 %v963
        %v1154 = vpop.f32.mrf.mxu0
        %v1155 = vadd.f32 0.0, %v1154
        %1156 = vmatmul.f32.gmra.mxu0 %v965
        %v1157 = vpop.f32.mrf.mxu0
        %v1158 = vadd.f32 0.0, %v1157
        %1159 = vmatmul.f32.gmra.mxu0 %v967
        %v1160 = vpop.f32.mrf.mxu0
        %v1161 = vadd.f32 0.0, %v1160
        %1162 = vmatmul.f32.gmra.mxu0 %v969
        %v1163 = vpop.f32.mrf.mxu0
        %v1164 = vadd.f32 0.0, %v1163
        %1165 = vdwg.mxu0
        %1166 = vmatpush.msra.mxu0 %v646
        %1167 = vmatpush.msra.mxu0 %v644
        %1168 = vmatpush.msra.mxu0 %v642
        %1169 = vmatpush.msra.mxu0 %v640
        %1170 = vmatpush.msra.mxu0 %v638
        %1171 = vmatpush.msra.mxu0 %v636
        %1172 = vmatpush.msra.mxu0 %v634
        %1173 = vmatpush.msra.mxu0 %v632
        %1174 = vmatpush.msra.mxu0 %v630
        %1175 = vmatpush.msra.mxu0 %v628
        %1176 = vmatpush.msra.mxu0 %v626
        %1177 = vmatpush.msra.mxu0 %v624
        %1178 = vmatpush.msra.mxu0 %v622
        %1179 = vmatpush.msra.mxu0 %v620
        %1180 = vmatpush.msra.mxu0 %v618
        %1181 = vmatpush.msra.mxu0 %v616
        %1182 = vmatmul.f32.gmra.mxu0 %v940
        %v1183 = vpop.f32.mrf.mxu0
        %v1184 = vadd.f32 %v1119, %v1183
        %1185 = vmatmul.f32.gmra.mxu0 %v942
        %v1186 = vpop.f32.mrf.mxu0
        %v1187 = vadd.f32 %v1122, %v1186
        %1188 = vmatmul.f32.gmra.mxu0 %v944
        %v1189 = vpop.f32.mrf.mxu0
        %v1190 = vadd.f32 %v1125, %v1189
        %1191 = vmatmul.f32.gmra.mxu0 %v946
        %v1192 = vpop.f32.mrf.mxu0
        %v1193 = vadd.f32 %v1128, %v1192
        %1194 = vmatmul.f32.gmra.mxu0 %v948
        %v1195 = vpop.f32.mrf.mxu0
        %v1196 = vadd.f32 %v1131, %v1195
        %1197 = vmatmul.f32.gmra.mxu0 %v950
        %v1198 = vpop.f32.mrf.mxu0
        %v1199 = vadd.f32 %v1134, %v1198
        %1200 = vmatmul.f32.gmra.mxu0 %v952
        %v1201 = vpop.f32.mrf.mxu0
        %v1202 = vadd.f32 %v1137, %v1201
        %1203 = vmatmul.f32.gmra.mxu0 %v954
        %v1204 = vpop.f32.mrf.mxu0
        %v1205 = vadd.f32 %v1140, %v1204
        %1206 = vmatmul.f32.gmra.mxu0 %v956
        %v1207 = vpop.f32.mrf.mxu0
        %v1208 = vadd.f32 %v1143, %v1207
        %1209 = vmatmul.f32.gmra.mxu0 %v958
        %v1210 = vpop.f32.mrf.mxu0
        %v1211 = vadd.f32 %v1146, %v1210
        %1212 = vmatmul.f32.gmra.mxu0 %v960
        %v1213 = vpop.f32.mrf.mxu0
        %v1214 = vadd.f32 %v1149, %v1213
        %1215 = vmatmul.f32.gmra.mxu0 %v962
        %v1216 = vpop.f32.mrf.mxu0
        %v1217 = vadd.f32 %v1152, %v1216
        %1218 = vmatmul.f32.gmra.mxu0 %v964
        %v1219 = vpop.f32.mrf.mxu0
        %v1220 = vadd.f32 %v1155, %v1219
        %1221 = vmatmul.f32.gmra.mxu0 %v966
        %v1222 = vpop.f32.mrf.mxu0
        %v1223 = vadd.f32 %v1158, %v1222
        %1224 = vmatmul.f32.gmra.mxu0 %v968
        %v1225 = vpop.f32.mrf.mxu0
        %v1226 = vadd.f32 %v1161, %v1225
        %1227 = vmatmul.f32.gmra.mxu0 %v970
        %v1228 = vpop.f32.mrf.mxu0
        %v1229 = vadd.f32 %v1164, %v1228
        %1230 = vdwg.mxu0
        %v1231 = vmul.f32 %v762, %v1054
        %v1232 = vmul.f32 %v892, %v1184
        %v1233 = vmul.f32 %v765, %v1057
        %v1234 = vmul.f32 %v895, %v1187
        %v1235 = vmul.f32 %v768, %v1060
        %v1236 = vmul.f32 %v898, %v1190
        %v1237 = vmul.f32 %v771, %v1063
        %v1238 = vmul.f32 %v901, %v1193
        %v1239 = vmul.f32 %v774, %v1066
        %v1240 = vmul.f32 %v904, %v1196
        %v1241 = vmul.f32 %v777, %v1069
        %v1242 = vmul.f32 %v907, %v1199
        %v1243 = vmul.f32 %v780, %v1072
        %v1244 = vmul.f32 %v910, %v1202
        %v1245 = vmul.f32 %v783, %v1075
        %v1246 = vmul.f32 %v913, %v1205
        %v1247 = vmul.f32 %v786, %v1078
        %v1248 = vmul.f32 %v916, %v1208
        %v1249 = vmul.f32 %v789, %v1081
        %v1250 = vmul.f32 %v919, %v1211
        %v1251 = vmul.f32 %v792, %v1084
        %v1252 = vmul.f32 %v922, %v1214
        %v1253 = vmul.f32 %v795, %v1087
        %v1254 = vmul.f32 %v925, %v1217
        %v1255 = vmul.f32 %v798, %v1090
        %v1256 = vmul.f32 %v928, %v1220
        %v1257 = vmul.f32 %v801, %v1093
        %v1258 = vmul.f32 %v931, %v1223
        %v1259 = vmul.f32 %v804, %v1096
        %v1260 = vmul.f32 %v934, %v1226
        %v1261 = vmul.f32 %v807, %v1099
        %v1262 = vmul.f32 %v937, %v1229
        %v1263 = vadd.f32 %v1231, %v1233
        %v1264 = vadd.f32 %v1263, %v1235
        %v1265 = vadd.f32 %v1264, %v1237
        %v1266 = vadd.f32 %v1265, %v1239
        %v1267 = vadd.f32 %v1266, %v1241
        %v1268 = vadd.f32 %v1267, %v1243
        %v1269 = vadd.f32 %v1268, %v1245
        %v1270 = vadd.f32 %v1269, %v1247
        %v1271 = vadd.f32 %v1270, %v1249
        %v1272 = vadd.f32 %v1271, %v1251
        %v1273 = vadd.f32 %v1272, %v1253
        %v1274 = vadd.f32 %v1273, %v1255
        %v1275 = vadd.f32 %v1274, %v1257
        %v1276 = vadd.f32 %v1275, %v1259
        %v1277 = vadd.f32 %v1276, %v1261
        %v1278 = vrot.slane %v1277, 4
        %v1279 = vadd.f32 %v1277, %v1278
        %v1280 = vrot.slane %v1279, 2
        %v1281 = vadd.f32 %v1279, %v1280
        %v1282 = vrot.slane %v1281, 1
        %v1283 = vadd.f32 %v1281, %v1282
        %v1284 = vadd.f32 %v1232, %v1234
        %v1285 = vadd.f32 %v1284, %v1236
        %v1286 = vadd.f32 %v1285, %v1238
        %v1287 = vadd.f32 %v1286, %v1240
        %v1288 = vadd.f32 %v1287, %v1242
        %v1289 = vadd.f32 %v1288, %v1244
        %v1290 = vadd.f32 %v1289, %v1246
        %v1291 = vadd.f32 %v1290, %v1248
        %v1292 = vadd.f32 %v1291, %v1250
        %v1293 = vadd.f32 %v1292, %v1252
        %v1294 = vadd.f32 %v1293, %v1254
        %v1295 = vadd.f32 %v1294, %v1256
        %v1296 = vadd.f32 %v1295, %v1258
        %v1297 = vadd.f32 %v1296, %v1260
        %v1298 = vadd.f32 %v1297, %v1262
        %v1299 = vrot.slane %v1298, 4
        %v1300 = vadd.f32 %v1298, %v1299
        %v1301 = vrot.slane %v1300, 2
        %v1302 = vadd.f32 %v1300, %v1301
        %v1303 = vrot.slane %v1302, 1
        %v1304 = vadd.f32 %v1302, %v1303
        %v1305 = vxor.u32 %v1283, 2147483648
        %v1306 = vxor.u32 %v1304, 2147483648
        %v1307 = vmul.f32 %v1305, 1.442695
        %v1308 = vpow.pop %v1307
        %v1309 = vmul.f32 %v1306, 1.442695
        %v1310 = vpow.pop %v1309
        %v1311 = vadd.f32 %v1308, 1.0
        %v1312 = vadd.f32 %v1310, 1.0
        %v1313 = vrcp.pop %v1311
        %v1314 = vmul.f32 %v1311, %v1313
        %v1315 = vsub.f32 1.0, %v1314
        %v1316 = vmul.f32 %v1313, %v1315
        %v1317 = vadd.f32 %v1313, %v1316
        %vm1318 = vweird.f32 %v1311
        %vm1319 = vweird.f32 %v1313
        %vm1320 = vmor %vm1318, %vm1319
        %v1321 = vsel %vm1320, %v1313, %v1317
        %v1322 = vand.u32 2147483647, %v1311
        %vm1323 = vcmp.eq.f32.partialorder %v1322, 8.507059e+37
        %v1324 = vand.u32 %v1311, 2147483648
        %v1325 = vor.u32 1.1754944e-38, %v1324
        %v1326 = vsel %vm1323, %v1325, %v1321
        %v1327 = vmul.f32 1.0, %v1326
        %v1328 = vrcp.pop %v1312
        %v1329 = vmul.f32 %v1312, %v1328
        %v1330 = vsub.f32 1.0, %v1329
        %v1331 = vmul.f32 %v1328, %v1330
        %v1332 = vadd.f32 %v1328, %v1331
        %vm1333 = vweird.f32 %v1312
        %vm1334 = vweird.f32 %v1328
        %vm1335 = vmor %vm1333, %vm1334
        %v1336 = vsel %vm1335, %v1328, %v1332
        %v1337 = vand.u32 2147483647, %v1312
        %vm1338 = vcmp.eq.f32.partialorder %v1337, 8.507059e+37
        %v1339 = vand.u32 %v1312, 2147483648
        %v1340 = vor.u32 1.1754944e-38, %v1339
        %v1341 = vsel %vm1338, %v1340, %v1336
        %v1342 = vmul.f32 1.0, %v1341
        %v1345 = vrot.slane %v1342, 7
        %vm1346 = vcmask 1040384
        %v1347 = vsel %vm1346, %v1327, %v1345
        %v1349 = vlaneseq
        %vm1350 = vcmp.ge.s32.totalorder %v1349, 0
        %vm1351 = vcmp.lt.s32.totalorder %v1349, 256
        %vm1352 = vmand %vm1350, %vm1351
        %1353 = vst.msk [vmem:[%s221] sm:$0x3] %vm1352, %v1347
        %s1354 = sand.u32 %s97, 1
        %s1355 = scalar_lea.sflag [#allocation4], %s1354
        %s1356 = sand.u32 %s97, 1
        %s1357 = smul.addr %s1356, 2
        %s1358 = scalar_lea.vmem [#allocation8], %s1357
        // Predicated region
        $region45: #{tpu_custom_call.1} parent=31 // pred_check
          %p1359 = pneg %p107
        $region46: #{tpu_custom_call.1} parent=31 // pred_check_branch
          %1361 = sbr.rel (%p1359) target = $region48
        $region47: #{tpu_custom_call.1} parent=31 // pred_region
          %1363 = vsyncadd %s1355, 0
          %s1364 = smul.addr %s21, 2
          %s1365 = scalar_lea.hbm %s3, %s1364
          %s1367 = sshll.u32 %s1358, 4
          %s1368 = int_to_ptr.vmem [resolvable:$true] %s1367
          %s1369 = sshll.u32 %s1365, 4
          %s1370 = int_to_ptr.hbm [resolvable:$true] %s1369
          %1372 = dma.vmem_to_hbm [thread:$0]  %s1368, 32, %s1370, %s1355
        $region48: #{tpu_custom_call.1} parent=31 // pred_fallthru
          _
      $region32: #{tpu_custom_call.1} parent=5 // pred_fallthru
        _
      %p1373 = scmp.le.s32.totalorder 2, %s16
      // Predicated region
      $region49: #{tpu_custom_call.1} parent=5 // pred_check
        %p1374 = pneg %p1373
      $region50: #{tpu_custom_call.1} parent=5 // pred_check_branch
        %1376 = sbr.rel (%p1374) target = $region52
      $region51: #{tpu_custom_call.1} parent=5 // pred_region
        %s1377 = ssub.s32 %s16, 2
        // Predicated region
        $region53: #{tpu_custom_call.1} parent=51 // pred_check
          %p1378 = pneg %p113
        $region54: #{tpu_custom_call.1} parent=51 // pred_check_branch
          %1380 = sbr.rel (%p1378) target = $region56
        $region55: #{tpu_custom_call.1} parent=51 // pred_region
          %s1381 = sand.u32 %s98, 1
          %s1382 = scalar_lea.sflag [#allocation4], %s1381
          %s1383 = sand.u32 %s98, 1
          %s1384 = smul.addr %s1383, 2
          %s1385 = scalar_lea.vmem [#allocation8], %s1384
          %1387 = dma.done %s1382, 32
        $region56: #{tpu_custom_call.1} parent=51 // pred_fallthru
          _
      $region52: #{tpu_custom_call.1} parent=5 // pred_fallthru
        _
    $region6: #{tpu_custom_call.1} parent=1 // loop_footer
      %s20 = sadd.s32 1, %s16
    $region7: #{tpu_custom_call.1} parent=1 // loop_footer_branch
      %15 = sbr.rel target = $region3
    $region8: #{tpu_custom_call.1} parent=1 // loop_exit
      _
    %1388 = vsyncpa [#allocation3], 1
    %s1389 = scalar_lea.sflag [#allocation3], 1
    %1390 = vsyncpa %s1389, 1
    %1391 = vsyncpa [#allocation6], 1
    %1392 = vsyncpa [#allocation4], 1
    %s1393 = scalar_lea.sflag [#allocation4], 1
    %1394 = vsyncpa %s1393, 1

</llo_original>
